<compile_context>
chip_gen: v5e
topology: v5e:2x2
jax: 0.10.0
libtpu: 0.0.40
codegen_flags: <defaults>
</compile_context>

<pallas_src>
import jax
import jax.numpy as jnp
from jax.experimental import pallas as pl
from jax.experimental.pallas import tpu as pltpu


def classifier_kernel(x_ref, w_ref, b_ref, o_ref):
    # bf16 operands on the MXU, f32 accumulation; bias add in f32 on the VPU.
    x = x_ref[...].astype(jnp.bfloat16)
    y = jnp.dot(x, w_ref[...], preferred_element_type=jnp.float32)
    o_ref[...] = (y + b_ref[...]).astype(o_ref.dtype)


def classifier_forward(x, w_bf16, b, *, batch_tile=None):
    B, in_dim = x.shape
    n_classes = w_bf16.shape[1]
    if batch_tile is None:
        # Largest tile that keeps the MXU fed; full batch if it is small.
        batch_tile = B if B <= 256 else 256
    assert B % batch_tile == 0  # TODO(synk): pad ragged batch tails if needed
    grid = (B // batch_tile,)

    flops = 2 * B * in_dim * n_classes
    bytes_accessed = (x.size * x.dtype.itemsize
                      + w_bf16.size * w_bf16.dtype.itemsize
                      + b.size * b.dtype.itemsize
                      + B * n_classes * 4)

    return pl.pallas_call(
        classifier_kernel,
        out_shape=jax.ShapeDtypeStruct((B, n_classes), jnp.float32),
        grid_spec=pltpu.PrefetchScalarGridSpec(
            num_scalar_prefetch=0,
            grid=grid,
            in_specs=[
                pl.BlockSpec((batch_tile, in_dim), lambda i: (i, 0)),
                # Constant block index -> weight/bias stay VMEM-resident across
                # batch tiles (never re-DMA'd).
                pl.BlockSpec((in_dim, n_classes), lambda i: (0, 0)),
                pl.BlockSpec((1, n_classes), lambda i: (0, 0)),
            ],
            out_specs=pl.BlockSpec((batch_tile, n_classes), lambda i: (i, 0)),
        ),
        compiler_params=pltpu.CompilerParams(
            dimension_semantics=("parallel",)),
        cost_estimate=pl.CostEstimate(
            flops=flops, transcendentals=0, bytes_accessed=bytes_accessed),
    )(x, w_bf16, b)


def init_params(key, in_dim, n_classes):
    # Mirrors PyTorch nn.Linear init: U(-1/sqrt(fan_in), 1/sqrt(fan_in)).
    # Weight stored transposed ([in_dim, n_classes]) and cast to bf16 for the MXU.
    kw, kb = jax.random.split(key)
    bound = 1.0 / jnp.sqrt(in_dim)
    w = jax.random.uniform(kw, (in_dim, n_classes), jnp.float32, -bound, bound)
    b = jax.random.uniform(kb, (1, n_classes), jnp.float32, -bound, bound)
    return w.astype(jnp.bfloat16), b


if __name__ == "__main__":
    IN_DIM = 256      # bottleneck feature width fed to the classifier
    N_CLASSES = 31    # e.g. Office-31 classes in MADA
    B = 8

    key = jax.random.PRNGKey(0)
    kx, kp = jax.random.split(key)
    x = jax.random.normal(kx, (B, IN_DIM), jnp.float32)
    w_bf16, b = init_params(kp, IN_DIM, N_CLASSES)

    out = classifier_forward(x, w_bf16, b)
    jax.block_until_ready(out)
    assert out.shape == (B, N_CLASSES)

    # Reference 1: identical precision policy (bf16 matmul operands, f32 accumulate).
    ref_bf16 = (jnp.dot(x.astype(jnp.bfloat16), w_bf16,
                        preferred_element_type=jnp.float32) + b)
    assert jnp.allclose(out, ref_bf16, atol=1e-4, rtol=1e-4)

    # Reference 2: original f32 nn.Linear semantics (loose tol covers bf16 cast).
    ref_f32 = x @ w_bf16.astype(jnp.float32) + b
    assert jnp.allclose(out, ref_f32, atol=2e-2, rtol=2e-2)

    print("KERNEL_OK")
</pallas_src>

<mosaic_0001>
module attributes {stable_mosaic.version = 11 : i64} {
  func.func @classifier_kernel(%arg0: i32, %arg1: memref<8x256xf32, #tpu.memory_space<vmem>>, %arg2: memref<256x31xbf16, #tpu.memory_space<vmem>>, %arg3: memref<1x31xf32, #tpu.memory_space<vmem>>, %arg4: memref<8x31xf32, #tpu.memory_space<vmem>>) attributes {dimension_semantics = [#tpu.dimension_semantics<parallel>], iteration_bounds = array<i64: 1>, scalar_prefetch = 0 : i64, scratch_operands = 0 : i64, tpu.core_type = #tpu.core_type<tc>, window_params = [{transform_indices = @transform_0, window_bounds = array<i64: 8, 256>}, {pipeline_mode = #tpu.pipeline_mode<synchronous>, transform_indices = @transform_1, window_bounds = array<i64: 256, 31>}, {pipeline_mode = #tpu.pipeline_mode<synchronous>, transform_indices = @transform_2, window_bounds = array<i64: 1, 31>}, {transform_indices = @transform_3, window_bounds = array<i64: 8, 31>}]} {
    %c0 = arith.constant 0 : index
    %c0_0 = arith.constant 0 : index
    %0 = vector.load %arg1[%c0, %c0_0] : memref<8x256xf32, #tpu.memory_space<vmem>>, vector<8x256xf32>
    %1 = arith.truncf %0 : vector<8x256xf32> to vector<8x256xbf16>
    %c0_1 = arith.constant 0 : index
    %c0_2 = arith.constant 0 : index
    %2 = vector.load %arg2[%c0_1, %c0_2] : memref<256x31xbf16, #tpu.memory_space<vmem>>, vector<256x31xbf16>
    %cst = arith.constant dense<0.000000e+00> : vector<8x31xf32>
    %3 = tpu.matmul %1, %2, %cst {dimension_numbers = #tpu.dot_dimension_numbers<[1], [0], [0], [1], [0, 0, 1, 1], [], []>} : vector<8x256xbf16>, vector<256x31xbf16>, vector<8x31xf32> -> vector<8x31xf32>
    %c0_3 = arith.constant 0 : index
    %c0_4 = arith.constant 0 : index
    %4 = vector.load %arg3[%c0_3, %c0_4] : memref<1x31xf32, #tpu.memory_space<vmem>>, vector<1x31xf32>
    %5 = vector.broadcast %4 : vector<1x31xf32> to vector<8x31xf32>
    %6 = arith.addf %3, %5 : vector<8x31xf32>
    %c0_5 = arith.constant 0 : index
    %c0_6 = arith.constant 0 : index
    %7 = vector.load %arg4[%c0_5, %c0_6] : memref<8x31xf32, #tpu.memory_space<vmem>>, vector<8x31xf32>
    tpu.vector_store %arg4[%c0_5, %c0_6], %6 {strides = array<i32>} : memref<8x31xf32, #tpu.memory_space<vmem>>, vector<8x31xf32>,
    return
  }
  func.func @transform_0(%arg0: i32) -> (i32, i32) {
    %c0_i32 = arith.constant 0 : i32
    %c0_i32_0 = arith.constant 0 : i32
    return %arg0, %c0_i32 : i32, i32
  }
  func.func @transform_1(%arg0: i32) -> (i32, i32) {
    %c0_i32 = arith.constant 0 : i32
    %c0_i32_0 = arith.constant 0 : i32
    %c0_i32_1 = arith.constant 0 : i32
    return %c0_i32, %c0_i32_0 : i32, i32
  }
  func.func @transform_2(%arg0: i32) -> (i32, i32) {
    %c0_i32 = arith.constant 0 : i32
    %c0_i32_0 = arith.constant 0 : i32
    %c0_i32_1 = arith.constant 0 : i32
    return %c0_i32, %c0_i32_0 : i32, i32
  }
  func.func @transform_3(%arg0: i32) -> (i32, i32) {
    %c0_i32 = arith.constant 0 : i32
    %c0_i32_0 = arith.constant 0 : i32
    return %arg0, %c0_i32 : i32, i32
  }
}

</mosaic_0001>

<llo_original>
// kernel: tpu_custom_call.1
$region0: #{tpu_custom_call.1}
  #allocation0 [shape = 'u32[]', space=smem, size = 0x4, offset = 0x4, fixed_abs, tag = 'smem constant byte address 0x4 - core index']
  #allocation1 [shape = 'u32[72,128]{1,0:T(1,128)}', space=vmem, size = 0x9000, scoped, tag = 'internal scratch']
  %s0 = inlined_call_operand.vmem [shape: f32[8,256], index: 0, kind: input, shape index: {}]
  %s1 = inlined_call_operand.vmem [shape: bf16[256,31], index: 1, kind: input, shape index: {}]
  %s2 = inlined_call_operand.vmem [shape: f32[1,31], index: 2, kind: input, shape index: {}]
  %s3 = inlined_call_operand.hbm [shape: f32[8,31], index: 3, kind: output, shape index: {}]
  %s4 = sld [smem:[#allocation0]]
  $region22: #{tpu_custom_call.1} parent=0
    _
  %s6 = ssub.s32 1, %s4
  %s7 = scalar_select 0, %s6, %s4
  $region1: #{tpu_custom_call.1} parent=0
    #allocation2 [shape = 'u8[4096]{0}', space=vmem, size = 0x1000, scoped, tag = 'output window, operand 0, single buffered']
    #allocation3 [shape = 's32[1]{0}', space=sflag, size = 0x4, scoped, tag = 'scoped memory for tpu_custom_call.1']
    %8 = vsyncpa [#allocation3], 0
    // Predicated region
    $region2: #{tpu_custom_call.1} parent=1 // pred_check
      _
    $region3: #{tpu_custom_call.1} parent=1 // pred_check_branch
      %10 = sbr.rel (0) target = $region5
    $region4: #{tpu_custom_call.1} parent=1 // pred_region
      _
    $region5: #{tpu_custom_call.1} parent=1 // pred_fallthru
      _
    // Predicated region
    $region6: #{tpu_custom_call.1} parent=1 // pred_check
      _
    $region7: #{tpu_custom_call.1} parent=1 // pred_check_branch
      %12 = sbr.rel (0) target = $region9
    $region8: #{tpu_custom_call.1} parent=1 // pred_region
      _
    $region9: #{tpu_custom_call.1} parent=1 // pred_fallthru
      _
    // Predicated region
    $region10: #{tpu_custom_call.1} parent=1 // pred_check
      _
    $region11: #{tpu_custom_call.1} parent=1 // pred_check_branch
      %14 = sbr.rel (0) target = $region13
    $region12: #{tpu_custom_call.1} parent=1 // pred_region
      _
    $region13: #{tpu_custom_call.1} parent=1 // pred_fallthru
      _
    %v15 = vld [vmem:[%s0] sm:$0xff]
    %v16 = vld [vmem:[%s0 + $0x8] sm:$0xff]
    %v17 = vpack.c.bf16 %v15, %v15
    %v18 = vpack.c.bf16 %v16, %v16
    %v19 = vld [vmem:[%s1] sm:$0xf]
    %v20 = vld [vmem:[%s1 + $0x4] sm:$0xf]
    %v21 = vld [vmem:[%s1 + $0x8] sm:$0xf]
    %v22 = vld [vmem:[%s1 + $0xc] sm:$0xf]
    %v23 = vld [vmem:[%s1 + $0x10] sm:$0xf]
    %v24 = vld [vmem:[%s1 + $0x14] sm:$0xf]
    %v25 = vld [vmem:[%s1 + $0x18] sm:$0xf]
    %v26 = vld [vmem:[%s1 + $0x1c] sm:$0xf]
    %v27 = vld [vmem:[%s1 + $0x20] sm:$0xf]
    %v28 = vld [vmem:[%s1 + $0x24] sm:$0xf]
    %v29 = vld [vmem:[%s1 + $0x28] sm:$0xf]
    %v30 = vld [vmem:[%s1 + $0x2c] sm:$0xf]
    %v31 = vld [vmem:[%s1 + $0x30] sm:$0xf]
    %v32 = vld [vmem:[%s1 + $0x34] sm:$0xf]
    %v33 = vld [vmem:[%s1 + $0x38] sm:$0xf]
    %v34 = vld [vmem:[%s1 + $0x3c] sm:$0xf]
    %v35 = vld [vmem:[%s1 + $0x40] sm:$0xf]
    %v36 = vld [vmem:[%s1 + $0x44] sm:$0xf]
    %v37 = vld [vmem:[%s1 + $0x48] sm:$0xf]
    %v38 = vld [vmem:[%s1 + $0x4c] sm:$0xf]
    %v39 = vld [vmem:[%s1 + $0x50] sm:$0xf]
    %v40 = vld [vmem:[%s1 + $0x54] sm:$0xf]
    %v41 = vld [vmem:[%s1 + $0x58] sm:$0xf]
    %v42 = vld [vmem:[%s1 + $0x5c] sm:$0xf]
    %v43 = vld [vmem:[%s1 + $0x60] sm:$0xf]
    %v44 = vld [vmem:[%s1 + $0x64] sm:$0xf]
    %v45 = vld [vmem:[%s1 + $0x68] sm:$0xf]
    %v46 = vld [vmem:[%s1 + $0x6c] sm:$0xf]
    %v47 = vld [vmem:[%s1 + $0x70] sm:$0xf]
    %v48 = vld [vmem:[%s1 + $0x74] sm:$0xf]
    %v49 = vld [vmem:[%s1 + $0x78] sm:$0xf]
    %v50 = vld [vmem:[%s1 + $0x7c] sm:$0xf]
    %v51 = vld [vmem:[%s2] sm:$0x1]
    %v53 = vperm.slane %v51, 0
    %v87 = vunpack.c.l.b16 %v19
    %v88 = vunpack.c.l.b16 %v20
    %v89 = vunpack.c.l.b16 %v21
    %v90 = vunpack.c.l.b16 %v22
    %v91 = vunpack.c.l.b16 %v23
    %v92 = vunpack.c.l.b16 %v24
    %v93 = vunpack.c.l.b16 %v25
    %v94 = vunpack.c.l.b16 %v26
    %v95 = vunpack.c.l.b16 %v27
    %v96 = vunpack.c.l.b16 %v28
    %v97 = vunpack.c.l.b16 %v29
    %v98 = vunpack.c.l.b16 %v30
    %v99 = vunpack.c.l.b16 %v31
    %v100 = vunpack.c.l.b16 %v32
    %v101 = vunpack.c.l.b16 %v33
    %v102 = vunpack.c.l.b16 %v34
    %v103 = vunpack.c.l.b16 %v35
    %v104 = vunpack.c.l.b16 %v36
    %v105 = vunpack.c.l.b16 %v37
    %v106 = vunpack.c.l.b16 %v38
    %v107 = vunpack.c.l.b16 %v39
    %v108 = vunpack.c.l.b16 %v40
    %v109 = vunpack.c.l.b16 %v41
    %v110 = vunpack.c.l.b16 %v42
    %v111 = vunpack.c.l.b16 %v43
    %v112 = vunpack.c.l.b16 %v44
    %v113 = vunpack.c.l.b16 %v45
    %v114 = vunpack.c.l.b16 %v46
    %v115 = vunpack.c.l.b16 %v47
    %v116 = vunpack.c.l.b16 %v48
    %v117 = vunpack.c.l.b16 %v49
    %v118 = vunpack.c.l.b16 %v50
    %v119 = vpack.c.b16 %v88, %v87
    %v120 = vpack.c.b16 %v90, %v89
    %v121 = vpack.c.b16 %v92, %v91
    %v122 = vpack.c.b16 %v94, %v93
    %v123 = vpack.c.b16 %v96, %v95
    %v124 = vpack.c.b16 %v98, %v97
    %v125 = vpack.c.b16 %v100, %v99
    %v126 = vpack.c.b16 %v102, %v101
    %v127 = vpack.c.b16 %v104, %v103
    %v128 = vpack.c.b16 %v106, %v105
    %v129 = vpack.c.b16 %v108, %v107
    %v130 = vpack.c.b16 %v110, %v109
    %v131 = vpack.c.b16 %v112, %v111
    %v132 = vpack.c.b16 %v114, %v113
    %v133 = vpack.c.b16 %v116, %v115
    %v134 = vpack.c.b16 %v118, %v117
    %151 = vmatpush.bf16.msra.mxu0 %v126
    %152 = vmatpush.bf16.msra.mxu0 %v125
    %153 = vmatpush.bf16.msra.mxu0 %v124
    %154 = vmatpush.bf16.msra.mxu0 %v123
    %155 = vmatpush.bf16.msra.mxu0 %v122
    %156 = vmatpush.bf16.msra.mxu0 %v121
    %157 = vmatpush.bf16.msra.mxu0 %v120
    %158 = vmatpush.bf16.msra.mxu0 %v119
    %159 = vmatmul.bf16.gmra.mxu0 %v17
    %v160 = vpop.f32.mrf.mxu0
    %v161 = vadd.f32 %v53, %v160
    %v162 = vpop.f32.mrf.mxu0
    %163 = vdwg.mxu0
    %164 = vmatpush.bf16.msra.mxu0 %v134
    %165 = vmatpush.bf16.msra.mxu0 %v133
    %166 = vmatpush.bf16.msra.mxu0 %v132
    %167 = vmatpush.bf16.msra.mxu0 %v131
    %168 = vmatpush.bf16.msra.mxu0 %v130
    %169 = vmatpush.bf16.msra.mxu0 %v129
    %170 = vmatpush.bf16.msra.mxu0 %v128
    %171 = vmatpush.bf16.msra.mxu0 %v127
    %172 = vmatmul.bf16.gmra.mxu0 %v18
    %v173 = vpop.f32.mrf.mxu0
    %v174 = vadd.f32 %v161, %v173
    %v175 = vpop.f32.mrf.mxu0
    %176 = vdwg.mxu0
    %vm177 = vcmask 252928
    %178 = vst.msk [vmem:[#allocation2] sm:$0xff] %vm177, %v174
    // Predicated region
    $region14: #{tpu_custom_call.1} parent=1 // pred_check
      _
    $region15: #{tpu_custom_call.1} parent=1 // pred_check_branch
      %180 = sbr.rel (0) target = $region17
    $region16: #{tpu_custom_call.1} parent=1 // pred_region
      %182 = vsyncadd [#allocation3], 0
      %s184 = sshll.u32 [#allocation2], 4
      %s185 = int_to_ptr.vmem [resolvable:$true] %s184
      %s186 = sshll.u32 %s3, 4
      %s187 = int_to_ptr.hbm [resolvable:$true] %s186
      %189 = dma.vmem_to_hbm [thread:$0]  %s185, 128, %s187, [#allocation3]
    $region17: #{tpu_custom_call.1} parent=1 // pred_fallthru
      _
    // Predicated region
    $region18: #{tpu_custom_call.1} parent=1 // pred_check
      _
    $region19: #{tpu_custom_call.1} parent=1 // pred_check_branch
      %191 = sbr.rel (0) target = $region21
    $region20: #{tpu_custom_call.1} parent=1 // pred_region
      %193 = dma.done [#allocation3], 128
    $region21: #{tpu_custom_call.1} parent=1 // pred_fallthru
      _
    %194 = vsyncpa [#allocation3], 1

</llo_original>
